<compile_context>
chip_gen: v5e
topology: v5e:2x2
jax: 0.10.0
libtpu: 0.0.40
codegen_flags: <defaults>
</compile_context>

<pallas_src>
import jax
import jax.numpy as jnp
from jax.experimental import pallas as pl
from jax.experimental.pallas import tpu as pltpu


def _round_up(x, m):
    return ((x + m - 1) // m) * m


def _make_kernel(nb):
    """Kernel for a (nb, C_in, TL) activation block and (nb, C_out, TL) output block."""

    def kernel(x_ref, w_ref, b_ref, o_ref):
        # x_ref: (nb, C_in, TL)   w_ref: (C_out, C_in)   b_ref: (C_out, 1) f32
        # o_ref: (nb, C_out, TL)
        w = w_ref[...]
        b = b_ref[...]  # already f32 -> no per-step cast in the epilogue

        def one(i):
            x = jnp.maximum(x_ref[i], 0)                                  # ReLU (VPU)
            acc = jnp.dot(w, x, preferred_element_type=jnp.float32)       # (C_out, TL)
            o_ref[i] = (acc + b).astype(o_ref.dtype)

        if nb <= 8:
            for i in range(nb):                 # short static unroll
                one(i)
        else:
            def body(i, carry):
                one(i)
                return carry
            jax.lax.fori_loop(0, nb, body, 0)   # dynamic leading-axis index is cheap

    return kernel


def _plan_blocks(n, c_in, c_out, length, dtype):
    """Pick (nb, tl, vmem_limit) so double-buffered blocks fit comfortably in VMEM."""
    itemsize = jnp.dtype(dtype).itemsize
    sublane = max(8, 32 // itemsize)            # 8 for f32, 16 for bf16, 32 for int8/fp8
    c_in_p = _round_up(c_in, sublane)           # real VMEM footprint incl. sublane padding
    c_out_p = _round_up(c_out, sublane)
    bytes_per_col = (c_in_p + c_out_p) * itemsize   # per batch element, per length column

    # Device VMEM capacity (v7x: 64 MiB/TC, v5e/v6e: 128 MiB); conservative fallback.
    try:
        vmem_cap = int(getattr(pltpu.get_tpu_info(), "vmem_capacity_bytes", 64 << 20))
    except Exception:
        vmem_cap = 64 << 20

    # Single-buffered per-step budget for the activation+output blocks; headroom for
    # double buffering, resident weight/bias, and compiler scratch.
    per_step_budget = min(vmem_cap // 4, 16 << 20)
    vmem_limit = int(min(vmem_cap * 3 // 4, 2 * per_step_budget + (16 << 20)))

    max_cols = max(128, per_step_budget // max(bytes_per_col, 1))   # nb * tl columns/step

    if length >= max_cols:
        # Large-L regime: one batch element per step, even 128-aligned split of L.
        nb = 1
        n_l_tiles = pl.cdiv(length, max_cols)
        if n * n_l_tiles < 2 and length >= 256:
            n_l_tiles = 2                       # guarantee >=2 parallel steps (v7x megacore)
        tl = min(_round_up(pl.cdiv(length, n_l_tiles), 128), length)
    else:
        # Small-L regime: whole L per step; block batches to amortize per-step overhead.
        tl = length
        l_cols = _round_up(length, 128)         # lane padding of the VMEM tile
        nb = max(1, min(n, per_step_budget // max(bytes_per_col * l_cols, 1)))
        if nb >= n and n >= 2:
            nb = pl.cdiv(n, 2)                  # keep >=2 grid steps for megacore sharding
        if n == 1 and length >= 256:
            tl = min(_round_up(pl.cdiv(length, 2), 128), length)

    return nb, tl, vmem_limit


def convnsnp1d(x_ncl, weight, bias):
    """x_ncl: (N, C_in, L); weight: (C_out, C_in, 1); bias: (C_out,)."""
    n, c_in, length = x_ncl.shape
    c_out = weight.shape[0]
    itemsize = jnp.dtype(x_ncl.dtype).itemsize

    # kernel-size-1 conv == per-position channel matmul.
    w2d = weight[:, :, 0].astype(x_ncl.dtype)          # (C_out, C_in), x's dtype (MXU-friendly)
    b2d = bias.reshape(c_out, 1).astype(jnp.float32)   # (C_out, 1), kept in f32

    nb, tl, vmem_limit = _plan_blocks(n, c_in, c_out, length, x_ncl.dtype)
    grid = (pl.cdiv(n, nb), pl.cdiv(length, tl))

    cost = pl.CostEstimate(
        flops=2 * n * c_out * c_in * length + n * c_in * length,
        transcendentals=0,
        bytes_accessed=(n * c_in * length * itemsize        # x
                        + n * c_out * length * itemsize     # out
                        + c_out * c_in * itemsize           # weight
                        + c_out * 4),                       # bias (f32)
    )

    out = pl.pallas_call(
        _make_kernel(nb),
        out_shape=jax.ShapeDtypeStruct((n, c_out, length), x_ncl.dtype),
        grid_spec=pltpu.PrefetchScalarGridSpec(
            num_scalar_prefetch=0,
            grid=grid,
            in_specs=[
                pl.BlockSpec((nb, c_in, tl), lambda b, l: (b, 0, l)),   # activations
                pl.BlockSpec((c_out, c_in), lambda b, l: (0, 0)),       # weight (resident)
                pl.BlockSpec((c_out, 1), lambda b, l: (0, 0)),          # bias f32 (resident)
            ],
            out_specs=pl.BlockSpec((nb, c_out, tl), lambda b, l: (b, 0, l)),
        ),
        compiler_params=pltpu.CompilerParams(
            dimension_semantics=("parallel", "parallel"),
            vmem_limit_bytes=vmem_limit,
        ),
        cost_estimate=cost,
    )(x_ncl, w2d, b2d)
    return out


if __name__ == "__main__":
    key = jax.random.PRNGKey(0)
    k_x, k_w, k_b = jax.random.split(key, 3)

    # Small shapes consistent with the module's forward (Conv1d => NCL input).
    batch, n_inputs, n_outputs, length = 2, 4, 8, 16

    x = jax.random.normal(k_x, (batch, n_inputs, length), dtype=jnp.float32)

    # Deterministic parameter init mirroring the PyTorch module:
    #   weight ~ Normal(0, 0.01), shape (n_outputs, n_inputs, 1)
    #   bias   ~ Uniform(-1/sqrt(fan_in), 1/sqrt(fan_in)), fan_in = n_inputs * 1
    weight = 0.01 * jax.random.normal(k_w, (n_outputs, n_inputs, 1), dtype=jnp.float32)
    bound = 1.0 / jnp.sqrt(jnp.float32(n_inputs))
    bias = jax.random.uniform(k_b, (n_outputs,), dtype=jnp.float32,
                              minval=-bound, maxval=bound)

    out = convnsnp1d(x, weight, bias)
    out = jax.block_until_ready(out)

    # Pure-JAX reference check (relu -> 1x1 conv as channel matmul).
    ref = jnp.einsum("oc,ncl->nol", weight[:, :, 0],
                     jnp.maximum(x, 0.0)) + bias[None, :, None]
    assert out.shape == (batch, n_outputs, length)
    assert jnp.allclose(out, ref, atol=1e-5, rtol=1e-5)

    print("KERNEL_OK")
</pallas_src>

<mosaic_0001>
module attributes {stable_mosaic.version = 11 : i64} {
  func.func @kernel(%arg0: i32, %arg1: i32, %arg2: memref<1x4x16xf32, #tpu.memory_space<vmem>>, %arg3: memref<8x4xf32, #tpu.memory_space<vmem>>, %arg4: memref<8x1xf32, #tpu.memory_space<vmem>>, %arg5: memref<1x8x16xf32, #tpu.memory_space<vmem>>) attributes {dimension_semantics = [#tpu.dimension_semantics<parallel>, #tpu.dimension_semantics<parallel>], iteration_bounds = array<i64: 2, 1>, scalar_prefetch = 0 : i64, scratch_operands = 0 : i64, tpu.core_type = #tpu.core_type<tc>, window_params = [{transform_indices = @transform_0, window_bounds = array<i64: 1, 4, 16>}, {pipeline_mode = #tpu.pipeline_mode<synchronous>, transform_indices = @transform_1, window_bounds = array<i64: 8, 4>}, {pipeline_mode = #tpu.pipeline_mode<synchronous>, transform_indices = @transform_2, window_bounds = array<i64: 8, 1>}, {transform_indices = @transform_3, window_bounds = array<i64: 1, 8, 16>}]} {
    %c0 = arith.constant 0 : index
    %c0_0 = arith.constant 0 : index
    %0 = vector.load %arg3[%c0, %c0_0] : memref<8x4xf32, #tpu.memory_space<vmem>>, vector<8x4xf32>
    %c0_1 = arith.constant 0 : index
    %c0_2 = arith.constant 0 : index
    %1 = vector.load %arg4[%c0_1, %c0_2] : memref<8x1xf32, #tpu.memory_space<vmem>>, vector<8x1xf32>
    %c0_3 = arith.constant 0 : index
    %c0_4 = arith.constant 0 : index
    %c0_5 = arith.constant 0 : index
    %2 = vector.load %arg2[%c0_3, %c0_4, %c0_5] : memref<1x4x16xf32, #tpu.memory_space<vmem>>, vector<1x4x16xf32>
    %3 = vector.shape_cast %2 : vector<1x4x16xf32> to vector<4x16xf32>
    %cst = arith.constant 0.000000e+00 : f32
    %4 = vector.broadcast %cst : f32 to vector<4x16xf32>
    %5 = arith.maximumf %3, %4 : vector<4x16xf32>
    %cst_6 = arith.constant dense<0.000000e+00> : vector<8x16xf32>
    %6 = tpu.matmul %0, %5, %cst_6 {dimension_numbers = #tpu.dot_dimension_numbers<[1], [0], [0], [1], [0, 0, 1, 1], [], []>} : vector<8x4xf32>, vector<4x16xf32>, vector<8x16xf32> -> vector<8x16xf32>
    %7 = vector.broadcast %1 : vector<8x1xf32> to vector<8x16xf32>
    %8 = arith.addf %6, %7 : vector<8x16xf32>
    %c0_7 = arith.constant 0 : index
    %c0_8 = arith.constant 0 : index
    %c0_9 = arith.constant 0 : index
    %9 = vector.load %arg5[%c0_7, %c0_8, %c0_9] : memref<1x8x16xf32, #tpu.memory_space<vmem>>, vector<1x8x16xf32>
    %10 = vector.shape_cast %9 : vector<1x8x16xf32> to vector<8x16xf32>
    %11 = vector.shape_cast %8 : vector<8x16xf32> to vector<1x8x16xf32>
    tpu.vector_store %arg5[%c0_7, %c0_8, %c0_9], %11 {strides = array<i32>} : memref<1x8x16xf32, #tpu.memory_space<vmem>>, vector<1x8x16xf32>,
    return
  }
  func.func @transform_0(%arg0: i32, %arg1: i32) -> (i32, i32, i32) {
    %c0_i32 = arith.constant 0 : i32
    %c0_i32_0 = arith.constant 0 : i32
    return %arg0, %c0_i32, %arg1 : i32, i32, i32
  }
  func.func @transform_1(%arg0: i32, %arg1: i32) -> (i32, i32) {
    %c0_i32 = arith.constant 0 : i32
    %c0_i32_0 = arith.constant 0 : i32
    %c0_i32_1 = arith.constant 0 : i32
    return %c0_i32, %c0_i32_0 : i32, i32
  }
  func.func @transform_2(%arg0: i32, %arg1: i32) -> (i32, i32) {
    %c0_i32 = arith.constant 0 : i32
    %c0_i32_0 = arith.constant 0 : i32
    %c0_i32_1 = arith.constant 0 : i32
    return %c0_i32, %c0_i32_0 : i32, i32
  }
  func.func @transform_3(%arg0: i32, %arg1: i32) -> (i32, i32, i32) {
    %c0_i32 = arith.constant 0 : i32
    %c0_i32_0 = arith.constant 0 : i32
    return %arg0, %c0_i32, %arg1 : i32, i32, i32
  }
}

</mosaic_0001>

<llo_original>
// kernel: tpu_custom_call.1
$region0: #{tpu_custom_call.1}
  #allocation0 [shape = 'u32[]', space=smem, size = 0x4, offset = 0x4, fixed_abs, tag = 'smem constant byte address 0x4 - core index']
  #allocation1 [shape = 'u32[72,128]{1,0:T(1,128)}', space=vmem, size = 0x9000, scoped, tag = 'internal scratch']
  %s0 = inlined_call_operand.vmem [shape: f32[2,4,16], index: 0, kind: input, shape index: {}]
  %s1 = inlined_call_operand.vmem [shape: f32[8,4], index: 1, kind: input, shape index: {}]
  %s2 = inlined_call_operand.vmem [shape: f32[8,1], index: 2, kind: input, shape index: {}]
  %s3 = inlined_call_operand.hbm [shape: f32[2,8,16], index: 3, kind: output, shape index: {}]
  %s4 = sld [smem:[#allocation0]]
  $region45: #{tpu_custom_call.1} parent=0
    _
  %s6 = ssub.s32 1, %s4
  %s7 = scalar_select 0, %s6, %s4
  $region1: #{tpu_custom_call.1} parent=0
    #allocation2 [shape = 'u8[8192]{0}', space=vmem, size = 0x2000, scoped, tag = 'output window, operand 0']
    #allocation3 [shape = 's32[2]{0}', space=sflag, size = 0x8, scoped, tag = 'scoped memory for tpu_custom_call.1']
    %8 = vsyncpa [#allocation3], 0
    %s9 = scalar_lea.sflag [#allocation3], 1
    %10 = vsyncpa %s9, 0
    loop: start=0, step=1, limit=4
    $region2: #{tpu_custom_call.1} parent=1 // loop_pre_header
      _
    $region3: #{tpu_custom_call.1} parent=1 // loop_header
      %s12 = sphi 0, %s16
      %p13 = scmp.ge.s32.totalorder %s12, 4
      %s19 = sphi 0, %s31
      %s20 = sphi 0, %s27
      %s21 = sphi 0, %s19
      %s22 = sphi 0, %s20
      %s23 = sphi 0, %s21
      %s24 = sphi 0, %s22
      %s36 = sphi 0, %s38
      %s39 = sphi 0, %s36
      %s40 = sphi 0, %s39
      %s56 = sphi 0, %s40
      %s60 = sphi 0, %s60
      %s62 = sphi 0, %s60
      %s63 = sphi 0, %s62
      %s77 = sphi 0, %s63
      %s81 = sphi 0, %s81
      %s83 = sphi 0, %s81
      %s84 = sphi 0, %s83
      %s98 = sphi 0, %s84
      %s106 = sphi 0, %s108
      %s109 = sphi 0, %s106
      %s110 = sphi 0, %s109
      %s126 = sphi 0, %s110
    $region4: #{tpu_custom_call.1} parent=1 // loop_header_branch
      %15 = sbr.rel (%p13) target = $region8
    $region5: #{tpu_custom_call.1} parent=1 // loop_body
      %s17 = ssub.s32 %s12, 1
      %s18 = ssub.s32 %s12, 2
      %s25 = sadd.s32 1, %s20
      %p26 = scmp.ge.s32.totalorder %s25, 1
      %s27 = scalar_select %p26, 0, %s25
      %s28 = sadd.s32 1, %s19
      %s29 = scalar_select %p26, %s28, %s19
      %p30 = scmp.ge.s32.totalorder %s29, 2
      %s31 = scalar_select %p30, 0, %s29
      %s32 = ssub.s32 %s19, %s31
      %s33 = ssub.s32 %s20, %s27
      %s34 = sor.u32 %s32, %s33
      %p35 = scmp.eq.s32.totalorder %s34, 0
      %s37 = sadd.s32 %s36, 1
      %s38 = scalar_select %p35, %s36, %s37
      %p41 = pneg %p35
      %p42 = scmp.eq.s32.totalorder %s12, 1
      %p43 = por %p41, %p42
      %p44 = scmp.ne.s32.totalorder %s36, %s39
      %p45 = scmp.eq.s32.totalorder %s12, 0
      %p46 = por %p44, %p45
      %p47 = scmp.ne.s32.totalorder %s36, %s39
      %p48 = scmp.eq.s32.totalorder %s17, 1
      %p49 = por %p47, %p48
      %p50 = scmp.ne.s32.totalorder %s39, %s40
      %p51 = scmp.eq.s32.totalorder %s17, 0
      %p52 = por %p50, %p51
      %p53 = scmp.ne.s32.totalorder %s39, %s40
      %p54 = scmp.eq.s32.totalorder %s18, 1
      %p55 = por %p53, %p54
      %p57 = scmp.ne.s32.totalorder %s40, %s56
      %p58 = scmp.eq.s32.totalorder %s18, 0
      %p59 = por %p57, %p58
      %s61 = sadd.s32 %s60, 1
      %p64 = scmp.eq.s32.totalorder %s12, 1
      %p65 = scmp.ne.s32.totalorder %s60, %s62
      %p66 = scmp.eq.s32.totalorder %s12, 0
      %p67 = por %p65, %p66
      %p68 = scmp.ne.s32.totalorder %s60, %s62
      %p69 = scmp.eq.s32.totalorder %s17, 1
      %p70 = por %p68, %p69
      %p71 = scmp.ne.s32.totalorder %s62, %s63
      %p72 = scmp.eq.s32.totalorder %s17, 0
      %p73 = por %p71, %p72
      %p74 = scmp.ne.s32.totalorder %s62, %s63
      %p75 = scmp.eq.s32.totalorder %s18, 1
      %p76 = por %p74, %p75
      %p78 = scmp.ne.s32.totalorder %s63, %s77
      %p79 = scmp.eq.s32.totalorder %s18, 0
      %p80 = por %p78, %p79
      %s82 = sadd.s32 %s81, 1
      %p85 = scmp.eq.s32.totalorder %s12, 1
      %p86 = scmp.ne.s32.totalorder %s81, %s83
      %p87 = scmp.eq.s32.totalorder %s12, 0
      %p88 = por %p86, %p87
      %p89 = scmp.ne.s32.totalorder %s81, %s83
      %p90 = scmp.eq.s32.totalorder %s17, 1
      %p91 = por %p89, %p90
      %p92 = scmp.ne.s32.totalorder %s83, %s84
      %p93 = scmp.eq.s32.totalorder %s17, 0
      %p94 = por %p92, %p93
      %p95 = scmp.ne.s32.totalorder %s83, %s84
      %p96 = scmp.eq.s32.totalorder %s18, 1
      %p97 = por %p95, %p96
      %p99 = scmp.ne.s32.totalorder %s84, %s98
      %p100 = scmp.eq.s32.totalorder %s18, 0
      %p101 = por %p99, %p100
      %s102 = ssub.s32 %s19, %s31
      %s103 = ssub.s32 %s20, %s27
      %s104 = sor.u32 %s102, %s103
      %p105 = scmp.eq.s32.totalorder %s104, 0
      %s107 = sadd.s32 %s106, 1
      %s108 = scalar_select %p105, %s106, %s107
      %p111 = pneg %p105
      %p112 = scmp.eq.s32.totalorder %s12, 1
      %p113 = por %p111, %p112
      %p114 = scmp.ne.s32.totalorder %s106, %s109
      %p115 = scmp.eq.s32.totalorder %s12, 0
      %p116 = por %p114, %p115
      %p117 = scmp.ne.s32.totalorder %s106, %s109
      %p118 = scmp.eq.s32.totalorder %s17, 1
      %p119 = por %p117, %p118
      %p120 = scmp.ne.s32.totalorder %s109, %s110
      %p121 = scmp.eq.s32.totalorder %s17, 0
      %p122 = por %p120, %p121
      %p123 = scmp.ne.s32.totalorder %s109, %s110
      %p124 = scmp.eq.s32.totalorder %s18, 1
      %p125 = por %p123, %p124
      %p127 = scmp.ne.s32.totalorder %s110, %s126
      %p128 = scmp.eq.s32.totalorder %s18, 0
      %p129 = por %p127, %p128
      %p130 = scmp.le.s32.totalorder 1, %s12
      %p131 = scmp.lt.s32.totalorder %s12, 3
      %p132 = pnand %p130, %p131
      %p133 = pneg %p132
      // Predicated region
      $region9: #{tpu_custom_call.1} parent=5 // pred_check
        _
      $region10: #{tpu_custom_call.1} parent=5 // pred_check_branch
        %135 = sbr.rel (%p132) target = $region12
      $region11: #{tpu_custom_call.1} parent=5 // pred_region
        %s136 = ssub.s32 %s12, 1
        // Predicated region
        $region13: #{tpu_custom_call.1} parent=11 // pred_check
          %p137 = pneg %p73
        $region14: #{tpu_custom_call.1} parent=11 // pred_check_branch
          %139 = sbr.rel (%p137) target = $region16
        $region15: #{tpu_custom_call.1} parent=11 // pred_region
          _
        $region16: #{tpu_custom_call.1} parent=11 // pred_fallthru
          _
        // Predicated region
        $region17: #{tpu_custom_call.1} parent=11 // pred_check
          %p140 = pneg %p94
        $region18: #{tpu_custom_call.1} parent=11 // pred_check_branch
          %142 = sbr.rel (%p140) target = $region20
        $region19: #{tpu_custom_call.1} parent=11 // pred_region
          _
        $region20: #{tpu_custom_call.1} parent=11 // pred_fallthru
          _
      $region12: #{tpu_custom_call.1} parent=5 // pred_fallthru
        _
      %p143 = scmp.lt.s32.totalorder %s12, 2
      // Predicated region
      $region21: #{tpu_custom_call.1} parent=5 // pred_check
        %p144 = pneg %p143
      $region22: #{tpu_custom_call.1} parent=5 // pred_check_branch
        %146 = sbr.rel (%p144) target = $region24
      $region23: #{tpu_custom_call.1} parent=5 // pred_region
        // Predicated region
        $region25: #{tpu_custom_call.1} parent=23 // pred_check
          %p147 = pneg %p46
        $region26: #{tpu_custom_call.1} parent=23 // pred_check_branch
          %149 = sbr.rel (%p147) target = $region28
        $region27: #{tpu_custom_call.1} parent=23 // pred_region
          %p150 = scmp.lt.s32.totalorder %s19, 1
          %s151 = scalar_select %p150, %s19, 1
          %p152 = scmp.lt.s32.totalorder %s20, 0
          %s153 = scalar_select %p152, %s20, 0
          %s154 = sadd.s32 %s153, %s151
          %s155 = smul.addr %s154, 4
          %s156 = scalar_lea.vmem %s0, %s155
        $region28: #{tpu_custom_call.1} parent=23 // pred_fallthru
          _
      $region24: #{tpu_custom_call.1} parent=5 // pred_fallthru
        _
      %p157 = scmp.le.s32.totalorder 1, %s12
      %p158 = scmp.lt.s32.totalorder %s12, 3
      %p159 = pnand %p157, %p158
      %p160 = pneg %p159
      // Predicated region
      $region29: #{tpu_custom_call.1} parent=5 // pred_check
        _
      $region30: #{tpu_custom_call.1} parent=5 // pred_check_branch
        %162 = sbr.rel (%p159) target = $region32
      $region31: #{tpu_custom_call.1} parent=5 // pred_region
        %s163 = ssub.s32 %s12, 1
        %p164 = scmp.lt.s32.totalorder %s21, 1
        %s165 = scalar_select %p164, %s21, 1
        %p166 = scmp.lt.s32.totalorder %s22, 0
        %s167 = scalar_select %p166, %s22, 0
        %s168 = sadd.s32 %s167, %s165
        %s169 = smul.addr %s168, 4
        %s170 = scalar_lea.vmem %s0, %s169
        %p171 = pneg %p52
        %p172 = pneg %p49
        %p173 = pneg %p73
        %p174 = pneg %p70
        %p175 = pneg %p94
        %p176 = pneg %p91
        %p177 = pneg %p122
        %p178 = pneg %p119
        %s179 = sand.u32 %s109, 1
        %s180 = scalar_lea.sflag [#allocation3], %s179
        %s181 = sand.u32 %s109, 1
        %s182 = smul.addr %s181, 8
        %s183 = scalar_lea.vmem [#allocation2], %s182
        %p184 = scmp.lt.s32.totalorder %s21, 1
        %s185 = scalar_select %p184, %s21, 1
        %p186 = scmp.lt.s32.totalorder %s22, 0
        %s187 = scalar_select %p186, %s22, 0
        %s188 = sadd.s32 %s187, %s185
        %s189 = smul.addr %s188, 4
        %s190 = scalar_lea.vmem %s0, %s189
        %v191 = vld [vmem:[%s1] sm:$0xff]
        %v192 = vld [vmem:[%s2] sm:$0xff]
        %v193 = vld [vmem:[%s190] sm:$0xf]
        %v194 = vmax.f32 %v193, 0.0
        %196 = vset.pattern.permute.xlu0 0
        %197 = vperm.xlu0 %196, %v192
        %v198 = vpop.permute.xlu0 %197
        %vm200 = vcmask 31744
        %v202 = vsel %vm200, %v191, 0
        %vm204 = vcmask 1043456
        %v206 = vsel %vm204, %v194, 0
        %208 = vmatpush.msra.mxu0 0.0
        %209 = vmatpush.msra.mxu0 0.0
        %210 = vmatpush.msra.mxu0 0.0
        %211 = vmatpush.msra.mxu0 0.0
        %212 = vmatpush.msra.mxu0 0.0
        %213 = vmatpush.msra.mxu0 0.0
        %214 = vmatpush.msra.mxu0 0.0
        %215 = vmatpush.msra.mxu0 0.0
        %216 = vmatpush.msra.mxu0 0.0
        %217 = vmatpush.msra.mxu0 0.0
        %218 = vmatpush.msra.mxu0 0.0
        %219 = vmatpush.msra.mxu0 0.0
        %220 = vmatpush.msra.mxu0 0.0
        %221 = vmatpush.msra.mxu0 0.0
        %222 = vmatpush.msra.mxu0 0.0
        %223 = vmatpush.msra.mxu0 %v206
        %224 = vmatmul.f32.gmra.mxu0 %v202
        %v225 = vpop.f32.mrf.mxu0
        %v226 = vadd.f32 %v198, %v225
        %227 = vdwg.mxu0
        %vm228 = vcmask 130048
        %229 = vst.msk [vmem:[%s183] sm:$0xff] %vm228, %v226
        %s230 = sand.u32 %s109, 1
        %s231 = scalar_lea.sflag [#allocation3], %s230
        %s232 = sand.u32 %s109, 1
        %s233 = smul.addr %s232, 8
        %s234 = scalar_lea.vmem [#allocation2], %s233
        // Predicated region
        $region33: #{tpu_custom_call.1} parent=31 // pred_check
          %p235 = pneg %p119
        $region34: #{tpu_custom_call.1} parent=31 // pred_check_branch
          %237 = sbr.rel (%p235) target = $region36
        $region35: #{tpu_custom_call.1} parent=31 // pred_region
          %239 = vsyncadd %s231, 0
          %s240 = sadd.s32 %s22, %s21
          %s241 = smul.addr %s240, 8
          %s242 = scalar_lea.hbm %s3, %s241
          %s244 = sshll.u32 %s234, 4
          %s245 = int_to_ptr.vmem [resolvable:$true] %s244
          %s246 = sshll.u32 %s242, 4
          %s247 = int_to_ptr.hbm [resolvable:$true] %s246
          %249 = dma.vmem_to_hbm [thread:$0]  %s245, 128, %s247, %s231
        $region36: #{tpu_custom_call.1} parent=31 // pred_fallthru
          _
      $region32: #{tpu_custom_call.1} parent=5 // pred_fallthru
        _
      %p250 = scmp.le.s32.totalorder 2, %s12
      // Predicated region
      $region37: #{tpu_custom_call.1} parent=5 // pred_check
        %p251 = pneg %p250
      $region38: #{tpu_custom_call.1} parent=5 // pred_check_branch
        %253 = sbr.rel (%p251) target = $region40
      $region39: #{tpu_custom_call.1} parent=5 // pred_region
        %s254 = ssub.s32 %s12, 2
        // Predicated region
        $region41: #{tpu_custom_call.1} parent=39 // pred_check
          %p255 = pneg %p125
        $region42: #{tpu_custom_call.1} parent=39 // pred_check_branch
          %257 = sbr.rel (%p255) target = $region44
        $region43: #{tpu_custom_call.1} parent=39 // pred_region
          %s258 = sand.u32 %s110, 1
          %s259 = scalar_lea.sflag [#allocation3], %s258
          %s260 = sand.u32 %s110, 1
          %s261 = smul.addr %s260, 8
          %s262 = scalar_lea.vmem [#allocation2], %s261
          %264 = dma.done %s259, 128
        $region44: #{tpu_custom_call.1} parent=39 // pred_fallthru
          _
      $region40: #{tpu_custom_call.1} parent=5 // pred_fallthru
        _
    $region6: #{tpu_custom_call.1} parent=1 // loop_footer
      %s16 = sadd.s32 1, %s12
    $region7: #{tpu_custom_call.1} parent=1 // loop_footer_branch
      %11 = sbr.rel target = $region3
    $region8: #{tpu_custom_call.1} parent=1 // loop_exit
      _
    %265 = vsyncpa [#allocation3], 1
    %s266 = scalar_lea.sflag [#allocation3], 1
    %267 = vsyncpa %s266, 1

</llo_original>
